<compile_context>
chip_gen: v5e
topology: v5e:2x2
jax: 0.10.0
libtpu: 0.0.40
codegen_flags: <defaults>
</compile_context>

<pallas_src>
import functools

import jax
import jax.numpy as jnp
from jax.experimental import pallas as pl
from jax.experimental.pallas import tpu as pltpu


def temporal_conv1d_kernel(x_ref, w_ref, b_ref, o_ref):
    """x_ref: (T, tile_p, C)  w_ref: (3, C_in, C_out)  b_ref: (1, C)  o_ref: (T, tile_p, C)."""
    T, tile_p, C = x_ref.shape

    # One big lane/sublane-aligned matmul per tap instead of T tiny per-timestep matmuls.
    x2d = x_ref[...].reshape(T * tile_p, C)
    z0 = jnp.dot(x2d, w_ref[0], preferred_element_type=jnp.float32).reshape(T, tile_p, C)
    z1 = jnp.dot(x2d, w_ref[1], preferred_element_type=jnp.float32).reshape(T, tile_p, C)
    z2 = jnp.dot(x2d, w_ref[2], preferred_element_type=jnp.float32).reshape(T, tile_p, C)

    bias = b_ref[...].astype(jnp.float32)           # (1, C): broadcast once per block
    y = z1 + bias                                   # center tap  (x[t]   @ W1^T)
    if T > 1:                                       # zero-padded boundary taps
        zero = jnp.zeros((1, tile_p, C), jnp.float32)
        y = y + jnp.concatenate([zero, z0[: T - 1]], axis=0)   # x[t-1] @ W0^T
        y = y + jnp.concatenate([z2[1:], zero], axis=0)        # x[t+1] @ W2^T

    o_ref[...] = y.astype(o_ref.dtype)              # single lane-dense block store


def _pick_tile_p(p, T, C, budget_bytes=24 * 1024 * 1024):
    """Largest row tile (multiple of 8, divisor of p) whose live f32 slabs fit the budget."""
    # ~8 block-sized live f32 slabs: 2x double-buffered input, 2x output, z0/z1/z2/y.
    max_rows = max(8, budget_bytes // (8 * T * C * 4))
    for cand in (2048, 1024, 512, 256, 128, 64, 32, 16, 8):
        if cand <= max_rows and p % cand == 0:
            return cand
    return p  # full-extent block is always legal


def temporal_conv1d_pallas(x4, weight, bias, *, out_dtype=None):
    """x4: (n_batch, T, p, C). weight: (C_out, C_in, 3) (PyTorch Conv1d layout). bias: (C,)."""
    n_batch, T, p, C = x4.shape
    assert p % 8 == 0, "p must be a multiple of 8"  # TODO(synk): pad ragged p on the host
    out_dtype = x4.dtype if out_dtype is None else out_dtype

    # Tap k as a (C_in, C_out) matrix so that x @ w[k] == x @ W_k^T (PyTorch semantics).
    w = jnp.transpose(weight, (2, 1, 0))            # (3, C_in, C_out)
    b2 = bias.reshape(1, C)

    tile_p = _pick_tile_p(p, T, C)
    grid = (n_batch, p // tile_p)

    block_f32_bytes = T * tile_p * C * 4
    w_bytes = w.size * w.dtype.itemsize + b2.size * b2.dtype.itemsize
    vmem_bytes = 8 * block_f32_bytes + 2 * w_bytes + (4 << 20)
    vmem_limit = int(min(max(vmem_bytes, 32 << 20), 48 << 20))   # stays safe on v7x (64 MiB)

    return pl.pallas_call(
        temporal_conv1d_kernel,
        out_shape=jax.ShapeDtypeStruct((n_batch, T, p, C), out_dtype),
        grid_spec=pltpu.PrefetchScalarGridSpec(
            num_scalar_prefetch=0,
            grid=grid,
            in_specs=[
                # Whole-T, tile_p-row, full-C block: time-major access with no host transpose.
                pl.BlockSpec((None, T, tile_p, C), lambda b, j: (b, 0, j, 0)),
                pl.BlockSpec((3, C, C), lambda b, j: (0, 0, 0)),   # resident weights
                pl.BlockSpec((1, C), lambda b, j: (0, 0)),         # resident bias
            ],
            out_specs=pl.BlockSpec((None, T, tile_p, C), lambda b, j: (b, 0, j, 0)),
        ),
        compiler_params=pltpu.CompilerParams(
            dimension_semantics=("parallel", "parallel"),
            vmem_limit_bytes=vmem_limit,
        ),
    )(x4, w, b2)


def temporal1d_forward(x, weight, bias, n_segment, *, use_bf16=False):
    """Mirrors Temporal1D.forward. x: (nt, p, c); nt = n_batch * n_segment. net == identity."""
    nt, p, c = x.shape
    n_batch = nt // n_segment
    out_dtype = x.dtype
    x4 = x.reshape(n_batch, n_segment, p, c)        # layout-free reshape; NO transpose
    if use_bf16:
        # Optional (v6e/v7x): bf16 matmul inputs, f32 accumulation inside the kernel.
        x4 = x4.astype(jnp.bfloat16)
        weight = weight.astype(jnp.bfloat16)
    y4 = temporal_conv1d_pallas(x4, weight, bias, out_dtype=out_dtype)
    return y4.reshape(nt, p, c)                     # layout-free reshape back


def ref_forward(x, weight, bias, n_segment):
    """Pure-JAX reference that follows the PyTorch code literally."""
    nt, p, c = x.shape
    n_batch = nt // n_segment
    xc = (
        x.reshape(n_batch, n_segment, p, c)
        .transpose(0, 2, 3, 1)
        .reshape(n_batch * p, c, n_segment)
    )
    xp = jnp.pad(xc, ((0, 0), (0, 0), (1, 1)))
    cols = []
    for t in range(n_segment):
        window = xp[:, :, t:t + 3]                  # (B, C_in, 3)
        cols.append(jnp.einsum("bik,oik->bo", window, weight) + bias)
    y = jnp.stack(cols, axis=-1)                    # (B, C_out, T)
    y = (
        y.reshape(n_batch, p, c, n_segment)
        .transpose(0, 3, 1, 2)
        .reshape(nt, p, c)
    )
    return y


if __name__ == "__main__":
    n_segment = 3
    n_batch = 2
    p = 128
    c = 128
    nt = n_batch * n_segment

    key = jax.random.PRNGKey(0)
    kx, kw, kb = jax.random.split(key, 3)
    x = jax.random.normal(kx, (nt, p, c), dtype=jnp.float32)
    # Conv1d(c, c, kernel_size=3) parameters, deterministic synthetic init.
    weight = jax.random.normal(kw, (c, c, 3), dtype=jnp.float32) * 0.05
    bias = jax.random.normal(kb, (c,), dtype=jnp.float32) * 0.05

    fwd = jax.jit(functools.partial(temporal1d_forward, n_segment=n_segment))
    out = fwd(x, weight, bias)
    jax.block_until_ready(out)

    ref = ref_forward(x, weight, bias, n_segment)
    assert out.shape == (nt, p, c)
    assert jnp.allclose(out, ref, atol=1e-3, rtol=1e-3), "mismatch vs reference"

    print("KERNEL_OK")
</pallas_src>

<mosaic_0001>
module attributes {stable_mosaic.version = 11 : i64} {
  func.func @temporal_conv1d_kernel(%arg0: i32, %arg1: i32, %arg2: memref<1x3x128x128xf32, #tpu.memory_space<vmem>>, %arg3: memref<3x128x128xf32, #tpu.memory_space<vmem>>, %arg4: memref<1x128xf32, #tpu.memory_space<vmem>>, %arg5: memref<1x3x128x128xf32, #tpu.memory_space<vmem>>) attributes {dimension_semantics = [#tpu.dimension_semantics<parallel>, #tpu.dimension_semantics<parallel>], iteration_bounds = array<i64: 2, 1>, scalar_prefetch = 0 : i64, scratch_operands = 0 : i64, tpu.core_type = #tpu.core_type<tc>, window_params = [{transform_indices = @transform_0, window_bounds = array<i64: 1, 3, 128, 128>}, {pipeline_mode = #tpu.pipeline_mode<synchronous>, transform_indices = @transform_1, window_bounds = array<i64: 3, 128, 128>}, {pipeline_mode = #tpu.pipeline_mode<synchronous>, transform_indices = @transform_2, window_bounds = array<i64: 1, 128>}, {transform_indices = @transform_3, window_bounds = array<i64: 1, 3, 128, 128>}]} {
    %c0 = arith.constant 0 : index
    %c0_0 = arith.constant 0 : index
    %c0_1 = arith.constant 0 : index
    %c0_2 = arith.constant 0 : index
    %0 = vector.load %arg2[%c0, %c0_0, %c0_1, %c0_2] : memref<1x3x128x128xf32, #tpu.memory_space<vmem>>, vector<1x3x128x128xf32>
    %1 = vector.shape_cast %0 : vector<1x3x128x128xf32> to vector<3x128x128xf32>
    %2 = vector.shape_cast %1 : vector<3x128x128xf32> to vector<384x128xf32>
    %c0_3 = arith.constant 0 : index
    %c0_4 = arith.constant 0 : index
    %c0_5 = arith.constant 0 : index
    %3 = vector.load %arg3[%c0_3, %c0_4, %c0_5] : memref<3x128x128xf32, #tpu.memory_space<vmem>>, vector<1x128x128xf32>
    %4 = vector.shape_cast %3 : vector<1x128x128xf32> to vector<128x128xf32>
    %cst = arith.constant dense<0.000000e+00> : vector<384x128xf32>
    %5 = tpu.matmul %2, %4, %cst {dimension_numbers = #tpu.dot_dimension_numbers<[1], [0], [0], [1], [0, 0, 1, 1], [], []>} : vector<384x128xf32>, vector<128x128xf32>, vector<384x128xf32> -> vector<384x128xf32>
    %6 = vector.shape_cast %5 : vector<384x128xf32> to vector<3x128x128xf32>
    %c1 = arith.constant 1 : index
    %c0_6 = arith.constant 0 : index
    %c0_7 = arith.constant 0 : index
    %7 = vector.load %arg3[%c1, %c0_6, %c0_7] : memref<3x128x128xf32, #tpu.memory_space<vmem>>, vector<1x128x128xf32>
    %8 = vector.shape_cast %7 : vector<1x128x128xf32> to vector<128x128xf32>
    %cst_8 = arith.constant dense<0.000000e+00> : vector<384x128xf32>
    %9 = tpu.matmul %2, %8, %cst_8 {dimension_numbers = #tpu.dot_dimension_numbers<[1], [0], [0], [1], [0, 0, 1, 1], [], []>} : vector<384x128xf32>, vector<128x128xf32>, vector<384x128xf32> -> vector<384x128xf32>
    %10 = vector.shape_cast %9 : vector<384x128xf32> to vector<3x128x128xf32>
    %c2 = arith.constant 2 : index
    %c0_9 = arith.constant 0 : index
    %c0_10 = arith.constant 0 : index
    %11 = vector.load %arg3[%c2, %c0_9, %c0_10] : memref<3x128x128xf32, #tpu.memory_space<vmem>>, vector<1x128x128xf32>
    %12 = vector.shape_cast %11 : vector<1x128x128xf32> to vector<128x128xf32>
    %cst_11 = arith.constant dense<0.000000e+00> : vector<384x128xf32>
    %13 = tpu.matmul %2, %12, %cst_11 {dimension_numbers = #tpu.dot_dimension_numbers<[1], [0], [0], [1], [0, 0, 1, 1], [], []>} : vector<384x128xf32>, vector<128x128xf32>, vector<384x128xf32> -> vector<384x128xf32>
    %14 = vector.shape_cast %13 : vector<384x128xf32> to vector<3x128x128xf32>
    %c0_12 = arith.constant 0 : index
    %c0_13 = arith.constant 0 : index
    %15 = vector.load %arg4[%c0_12, %c0_13] : memref<1x128xf32, #tpu.memory_space<vmem>>, vector<1x128xf32>
    %16 = vector.shape_cast %15 : vector<1x128xf32> to vector<1x1x128xf32>
    %17 = vector.broadcast %16 : vector<1x1x128xf32> to vector<3x128x128xf32>
    %18 = arith.addf %10, %17 : vector<3x128x128xf32>
    %cst_14 = arith.constant 0.000000e+00 : f32
    %19 = vector.broadcast %cst_14 : f32 to vector<1x128x128xf32>
    %20 = vector.extract_strided_slice %6 {offsets = [0, 0, 0], sizes = [2, 128, 128], strides = [1, 1, 1]} : vector<3x128x128xf32> to vector<2x128x128xf32>
    %21 = tpu.concatenate %19, %20 in 0 : vector<1x128x128xf32>, vector<2x128x128xf32> -> vector<3x128x128xf32>
    %22 = arith.addf %18, %21 : vector<3x128x128xf32>
    %23 = vector.extract_strided_slice %14 {offsets = [1, 0, 0], sizes = [2, 128, 128], strides = [1, 1, 1]} : vector<3x128x128xf32> to vector<2x128x128xf32>
    %24 = tpu.concatenate %23, %19 in 0 : vector<2x128x128xf32>, vector<1x128x128xf32> -> vector<3x128x128xf32>
    %25 = arith.addf %22, %24 : vector<3x128x128xf32>
    %c0_15 = arith.constant 0 : index
    %c0_16 = arith.constant 0 : index
    %c0_17 = arith.constant 0 : index
    %c0_18 = arith.constant 0 : index
    %26 = vector.load %arg5[%c0_15, %c0_16, %c0_17, %c0_18] : memref<1x3x128x128xf32, #tpu.memory_space<vmem>>, vector<1x3x128x128xf32>
    %27 = vector.shape_cast %26 : vector<1x3x128x128xf32> to vector<3x128x128xf32>
    %28 = vector.shape_cast %25 : vector<3x128x128xf32> to vector<1x3x128x128xf32>
    tpu.vector_store %arg5[%c0_15, %c0_16, %c0_17, %c0_18], %28 {strides = array<i32>} : memref<1x3x128x128xf32, #tpu.memory_space<vmem>>, vector<1x3x128x128xf32>,
    return
  }
  func.func @transform_0(%arg0: i32, %arg1: i32) -> (i32, i32, i32, i32) {
    %c0_i32 = arith.constant 0 : i32
    %c0_i32_0 = arith.constant 0 : i32
    %c0_i32_1 = arith.constant 0 : i32
    return %arg0, %c0_i32, %arg1, %c0_i32_0 : i32, i32, i32, i32
  }
  func.func @transform_1(%arg0: i32, %arg1: i32) -> (i32, i32, i32) {
    %c0_i32 = arith.constant 0 : i32
    %c0_i32_0 = arith.constant 0 : i32
    %c0_i32_1 = arith.constant 0 : i32
    %c0_i32_2 = arith.constant 0 : i32
    return %c0_i32, %c0_i32_0, %c0_i32_1 : i32, i32, i32
  }
  func.func @transform_2(%arg0: i32, %arg1: i32) -> (i32, i32) {
    %c0_i32 = arith.constant 0 : i32
    %c0_i32_0 = arith.constant 0 : i32
    %c0_i32_1 = arith.constant 0 : i32
    return %c0_i32, %c0_i32_0 : i32, i32
  }
  func.func @transform_3(%arg0: i32, %arg1: i32) -> (i32, i32, i32, i32) {
    %c0_i32 = arith.constant 0 : i32
    %c0_i32_0 = arith.constant 0 : i32
    %c0_i32_1 = arith.constant 0 : i32
    return %arg0, %c0_i32, %arg1, %c0_i32_0 : i32, i32, i32, i32
  }
}

</mosaic_0001>

<llo_original>
// kernel: temporal1d_forward.1
$region0: #{temporal1d_forward.1}
  #allocation0 [shape = 'u32[]', space=smem, size = 0x4, offset = 0x4, fixed_abs, tag = 'smem constant byte address 0x4 - core index']
  #allocation1 [shape = 'u32[72,128]{1,0:T(1,128)}', space=vmem, size = 0x9000, scoped, tag = 'internal scratch']
  %s0 = inlined_call_operand.vmem [shape: f32[2,3,128,128], index: 0, kind: input, shape index: {}]
  %s1 = inlined_call_operand.vmem [shape: f32[3,128,128], index: 1, kind: input, shape index: {}]
  %s2 = inlined_call_operand.vmem [shape: f32[1,128], index: 2, kind: input, shape index: {}]
  %s3 = inlined_call_operand.hbm [shape: f32[2,3,128,128], index: 3, kind: output, shape index: {}]
  %s4 = sld [smem:[#allocation0]]
  $region45: #{temporal1d_forward.1} parent=0
    _
  %s6 = ssub.s32 1, %s4
  %s7 = scalar_select 0, %s6, %s4
  $region1: #{temporal1d_forward.1} parent=0
    #allocation2 [shape = 'u8[393216]{0}', space=vmem, size = 0x60000, scoped, tag = 'output window, operand 0']
    #allocation3 [shape = 's32[2]{0}', space=sflag, size = 0x8, scoped, tag = 'scoped memory for temporal1d_forward.1']
    %8 = vsyncpa [#allocation3], 0
    %s9 = scalar_lea.sflag [#allocation3], 1
    %10 = vsyncpa %s9, 0
    loop: start=0, step=1, limit=4
    $region2: #{temporal1d_forward.1} parent=1 // loop_pre_header
      _
    $region3: #{temporal1d_forward.1} parent=1 // loop_header
      %s12 = sphi 0, %s16
      %p13 = scmp.ge.s32.totalorder %s12, 4
      %s19 = sphi 0, %s31
      %s20 = sphi 0, %s27
      %s21 = sphi 0, %s19
      %s22 = sphi 0, %s20
      %s23 = sphi 0, %s21
      %s24 = sphi 0, %s22
      %s36 = sphi 0, %s38
      %s39 = sphi 0, %s36
      %s40 = sphi 0, %s39
      %s56 = sphi 0, %s40
      %s60 = sphi 0, %s60
      %s62 = sphi 0, %s60
      %s63 = sphi 0, %s62
      %s77 = sphi 0, %s63
      %s81 = sphi 0, %s81
      %s83 = sphi 0, %s81
      %s84 = sphi 0, %s83
      %s98 = sphi 0, %s84
      %s106 = sphi 0, %s108
      %s109 = sphi 0, %s106
      %s110 = sphi 0, %s109
      %s126 = sphi 0, %s110
    $region4: #{temporal1d_forward.1} parent=1 // loop_header_branch
      %15 = sbr.rel (%p13) target = $region8
    $region5: #{temporal1d_forward.1} parent=1 // loop_body
      %s17 = ssub.s32 %s12, 1
      %s18 = ssub.s32 %s12, 2
      %s25 = sadd.s32 1, %s20
      %p26 = scmp.ge.s32.totalorder %s25, 1
      %s27 = scalar_select %p26, 0, %s25
      %s28 = sadd.s32 1, %s19
      %s29 = scalar_select %p26, %s28, %s19
      %p30 = scmp.ge.s32.totalorder %s29, 2
      %s31 = scalar_select %p30, 0, %s29
      %s32 = ssub.s32 %s19, %s31
      %s33 = ssub.s32 %s20, %s27
      %s34 = sor.u32 %s32, %s33
      %p35 = scmp.eq.s32.totalorder %s34, 0
      %s37 = sadd.s32 %s36, 1
      %s38 = scalar_select %p35, %s36, %s37
      %p41 = pneg %p35
      %p42 = scmp.eq.s32.totalorder %s12, 1
      %p43 = por %p41, %p42
      %p44 = scmp.ne.s32.totalorder %s36, %s39
      %p45 = scmp.eq.s32.totalorder %s12, 0
      %p46 = por %p44, %p45
      %p47 = scmp.ne.s32.totalorder %s36, %s39
      %p48 = scmp.eq.s32.totalorder %s17, 1
      %p49 = por %p47, %p48
      %p50 = scmp.ne.s32.totalorder %s39, %s40
      %p51 = scmp.eq.s32.totalorder %s17, 0
      %p52 = por %p50, %p51
      %p53 = scmp.ne.s32.totalorder %s39, %s40
      %p54 = scmp.eq.s32.totalorder %s18, 1
      %p55 = por %p53, %p54
      %p57 = scmp.ne.s32.totalorder %s40, %s56
      %p58 = scmp.eq.s32.totalorder %s18, 0
      %p59 = por %p57, %p58
      %s61 = sadd.s32 %s60, 1
      %p64 = scmp.eq.s32.totalorder %s12, 1
      %p65 = scmp.ne.s32.totalorder %s60, %s62
      %p66 = scmp.eq.s32.totalorder %s12, 0
      %p67 = por %p65, %p66
      %p68 = scmp.ne.s32.totalorder %s60, %s62
      %p69 = scmp.eq.s32.totalorder %s17, 1
      %p70 = por %p68, %p69
      %p71 = scmp.ne.s32.totalorder %s62, %s63
      %p72 = scmp.eq.s32.totalorder %s17, 0
      %p73 = por %p71, %p72
      %p74 = scmp.ne.s32.totalorder %s62, %s63
      %p75 = scmp.eq.s32.totalorder %s18, 1
      %p76 = por %p74, %p75
      %p78 = scmp.ne.s32.totalorder %s63, %s77
      %p79 = scmp.eq.s32.totalorder %s18, 0
      %p80 = por %p78, %p79
      %s82 = sadd.s32 %s81, 1
      %p85 = scmp.eq.s32.totalorder %s12, 1
      %p86 = scmp.ne.s32.totalorder %s81, %s83
      %p87 = scmp.eq.s32.totalorder %s12, 0
      %p88 = por %p86, %p87
      %p89 = scmp.ne.s32.totalorder %s81, %s83
      %p90 = scmp.eq.s32.totalorder %s17, 1
      %p91 = por %p89, %p90
      %p92 = scmp.ne.s32.totalorder %s83, %s84
      %p93 = scmp.eq.s32.totalorder %s17, 0
      %p94 = por %p92, %p93
      %p95 = scmp.ne.s32.totalorder %s83, %s84
      %p96 = scmp.eq.s32.totalorder %s18, 1
      %p97 = por %p95, %p96
      %p99 = scmp.ne.s32.totalorder %s84, %s98
      %p100 = scmp.eq.s32.totalorder %s18, 0
      %p101 = por %p99, %p100
      %s102 = ssub.s32 %s19, %s31
      %s103 = ssub.s32 %s20, %s27
      %s104 = sor.u32 %s102, %s103
      %p105 = scmp.eq.s32.totalorder %s104, 0
      %s107 = sadd.s32 %s106, 1
      %s108 = scalar_select %p105, %s106, %s107
      %p111 = pneg %p105
      %p112 = scmp.eq.s32.totalorder %s12, 1
      %p113 = por %p111, %p112
      %p114 = scmp.ne.s32.totalorder %s106, %s109
      %p115 = scmp.eq.s32.totalorder %s12, 0
      %p116 = por %p114, %p115
      %p117 = scmp.ne.s32.totalorder %s106, %s109
      %p118 = scmp.eq.s32.totalorder %s17, 1
      %p119 = por %p117, %p118
      %p120 = scmp.ne.s32.totalorder %s109, %s110
      %p121 = scmp.eq.s32.totalorder %s17, 0
      %p122 = por %p120, %p121
      %p123 = scmp.ne.s32.totalorder %s109, %s110
      %p124 = scmp.eq.s32.totalorder %s18, 1
      %p125 = por %p123, %p124
      %p127 = scmp.ne.s32.totalorder %s110, %s126
      %p128 = scmp.eq.s32.totalorder %s18, 0
      %p129 = por %p127, %p128
      %p130 = scmp.le.s32.totalorder 1, %s12
      %p131 = scmp.lt.s32.totalorder %s12, 3
      %p132 = pnand %p130, %p131
      %p133 = pneg %p132
      // Predicated region
      $region9: #{temporal1d_forward.1} parent=5 // pred_check
        _
      $region10: #{temporal1d_forward.1} parent=5 // pred_check_branch
        %135 = sbr.rel (%p132) target = $region12
      $region11: #{temporal1d_forward.1} parent=5 // pred_region
        %s136 = ssub.s32 %s12, 1
        // Predicated region
        $region13: #{temporal1d_forward.1} parent=11 // pred_check
          %p137 = pneg %p73
        $region14: #{temporal1d_forward.1} parent=11 // pred_check_branch
          %139 = sbr.rel (%p137) target = $region16
        $region15: #{temporal1d_forward.1} parent=11 // pred_region
          _
        $region16: #{temporal1d_forward.1} parent=11 // pred_fallthru
          _
        // Predicated region
        $region17: #{temporal1d_forward.1} parent=11 // pred_check
          %p140 = pneg %p94
        $region18: #{temporal1d_forward.1} parent=11 // pred_check_branch
          %142 = sbr.rel (%p140) target = $region20
        $region19: #{temporal1d_forward.1} parent=11 // pred_region
          _
        $region20: #{temporal1d_forward.1} parent=11 // pred_fallthru
          _
      $region12: #{temporal1d_forward.1} parent=5 // pred_fallthru
        _
      %p143 = scmp.lt.s32.totalorder %s12, 2
      // Predicated region
      $region21: #{temporal1d_forward.1} parent=5 // pred_check
        %p144 = pneg %p143
      $region22: #{temporal1d_forward.1} parent=5 // pred_check_branch
        %146 = sbr.rel (%p144) target = $region24
      $region23: #{temporal1d_forward.1} parent=5 // pred_region
        // Predicated region
        $region25: #{temporal1d_forward.1} parent=23 // pred_check
          %p147 = pneg %p46
        $region26: #{temporal1d_forward.1} parent=23 // pred_check_branch
          %149 = sbr.rel (%p147) target = $region28
        $region27: #{temporal1d_forward.1} parent=23 // pred_region
          %s150 = smul.u32 16, %s20
          %p151 = scmp.lt.s32.totalorder %s19, 1
          %s152 = scalar_select %p151, %s19, 1
          %p153 = scmp.lt.s32.totalorder %s150, 15
          %s154 = scalar_select %p153, %s150, 15
          %s155 = smul.addr %s152, 48
          %s156 = sadd.s32 %s154, %s155
          %s157 = smul.addr %s156, 8
          %s158 = scalar_lea.vmem %s0, %s157
          %s159 = smul.u32 16, %s20
        $region28: #{temporal1d_forward.1} parent=23 // pred_fallthru
          _
      $region24: #{temporal1d_forward.1} parent=5 // pred_fallthru
        _
      %p160 = scmp.le.s32.totalorder 1, %s12
      %p161 = scmp.lt.s32.totalorder %s12, 3
      %p162 = pnand %p160, %p161
      %p163 = pneg %p162
      // Predicated region
      $region29: #{temporal1d_forward.1} parent=5 // pred_check
        _
      $region30: #{temporal1d_forward.1} parent=5 // pred_check_branch
        %165 = sbr.rel (%p162) target = $region32
      $region31: #{temporal1d_forward.1} parent=5 // pred_region
        %s166 = ssub.s32 %s12, 1
        %s167 = smul.u32 16, %s22
        %p168 = scmp.lt.s32.totalorder %s21, 1
        %s169 = scalar_select %p168, %s21, 1
        %p170 = scmp.lt.s32.totalorder %s167, 15
        %s171 = scalar_select %p170, %s167, 15
        %s172 = smul.addr %s169, 48
        %s173 = sadd.s32 %s171, %s172
        %s174 = smul.addr %s173, 8
        %s175 = scalar_lea.vmem %s0, %s174
        %p176 = pneg %p52
        %p177 = pneg %p49
        %p178 = pneg %p73
        %p179 = pneg %p70
        %p180 = pneg %p94
        %p181 = pneg %p91
        %p182 = pneg %p122
        %p183 = pneg %p119
        %s184 = sand.u32 %s109, 1
        %s185 = scalar_lea.sflag [#allocation3], %s184
        %s186 = sand.u32 %s109, 1
        %s187 = smul.addr %s186, 384
        %s188 = scalar_lea.vmem [#allocation2], %s187
        %s189 = smul.u32 16, %s22
        %p190 = scmp.lt.s32.totalorder %s21, 1
        %s191 = scalar_select %p190, %s21, 1
        %p192 = scmp.lt.s32.totalorder %s189, 15
        %s193 = scalar_select %p192, %s189, 15
        %s194 = smul.addr %s191, 48
        %s195 = sadd.s32 %s193, %s194
        %s196 = smul.addr %s195, 8
        %s197 = scalar_lea.vmem %s0, %s196
        %s198 = smul.u32 16, %s22
        %s199 = smul.u32 16, %s22
        %v200 = vld [vmem:[%s197] sm:$0xff]
        %v201 = vld [vmem:[%s197 + $0x8] sm:$0xff]
        %v202 = vld [vmem:[%s197 + $0x10] sm:$0xff]
        %v203 = vld [vmem:[%s197 + $0x18] sm:$0xff]
        %v204 = vld [vmem:[%s197 + $0x20] sm:$0xff]
        %v205 = vld [vmem:[%s197 + $0x28] sm:$0xff]
        %v206 = vld [vmem:[%s197 + $0x30] sm:$0xff]
        %v207 = vld [vmem:[%s197 + $0x38] sm:$0xff]
        %v208 = vld [vmem:[%s197 + $0x40] sm:$0xff]
        %v209 = vld [vmem:[%s197 + $0x48] sm:$0xff]
        %v210 = vld [vmem:[%s197 + $0x50] sm:$0xff]
        %v211 = vld [vmem:[%s197 + $0x58] sm:$0xff]
        %v212 = vld [vmem:[%s197 + $0x60] sm:$0xff]
        %v213 = vld [vmem:[%s197 + $0x68] sm:$0xff]
        %v214 = vld [vmem:[%s197 + $0x70] sm:$0xff]
        %v215 = vld [vmem:[%s197 + $0x78] sm:$0xff]
        %v216 = vld [vmem:[%s197 + $0x80] sm:$0xff]
        %v217 = vld [vmem:[%s197 + $0x88] sm:$0xff]
        %v218 = vld [vmem:[%s197 + $0x90] sm:$0xff]
        %v219 = vld [vmem:[%s197 + $0x98] sm:$0xff]
        %v220 = vld [vmem:[%s197 + $0xa0] sm:$0xff]
        %v221 = vld [vmem:[%s197 + $0xa8] sm:$0xff]
        %v222 = vld [vmem:[%s197 + $0xb0] sm:$0xff]
        %v223 = vld [vmem:[%s197 + $0xb8] sm:$0xff]
        %v224 = vld [vmem:[%s197 + $0xc0] sm:$0xff]
        %v225 = vld [vmem:[%s197 + $0xc8] sm:$0xff]
        %v226 = vld [vmem:[%s197 + $0xd0] sm:$0xff]
        %v227 = vld [vmem:[%s197 + $0xd8] sm:$0xff]
        %v228 = vld [vmem:[%s197 + $0xe0] sm:$0xff]
        %v229 = vld [vmem:[%s197 + $0xe8] sm:$0xff]
        %v230 = vld [vmem:[%s197 + $0xf0] sm:$0xff]
        %v231 = vld [vmem:[%s197 + $0xf8] sm:$0xff]
        %v232 = vld [vmem:[%s197 + $0x100] sm:$0xff]
        %v233 = vld [vmem:[%s197 + $0x108] sm:$0xff]
        %v234 = vld [vmem:[%s197 + $0x110] sm:$0xff]
        %v235 = vld [vmem:[%s197 + $0x118] sm:$0xff]
        %v236 = vld [vmem:[%s197 + $0x120] sm:$0xff]
        %v237 = vld [vmem:[%s197 + $0x128] sm:$0xff]
        %v238 = vld [vmem:[%s197 + $0x130] sm:$0xff]
        %v239 = vld [vmem:[%s197 + $0x138] sm:$0xff]
        %v240 = vld [vmem:[%s197 + $0x140] sm:$0xff]
        %v241 = vld [vmem:[%s197 + $0x148] sm:$0xff]
        %v242 = vld [vmem:[%s197 + $0x150] sm:$0xff]
        %v243 = vld [vmem:[%s197 + $0x158] sm:$0xff]
        %v244 = vld [vmem:[%s197 + $0x160] sm:$0xff]
        %v245 = vld [vmem:[%s197 + $0x168] sm:$0xff]
        %v246 = vld [vmem:[%s197 + $0x170] sm:$0xff]
        %v247 = vld [vmem:[%s197 + $0x178] sm:$0xff]
        %v248 = vld [vmem:[%s1] sm:$0xff]
        %v249 = vld [vmem:[%s1 + $0x8] sm:$0xff]
        %v250 = vld [vmem:[%s1 + $0x10] sm:$0xff]
        %v251 = vld [vmem:[%s1 + $0x18] sm:$0xff]
        %v252 = vld [vmem:[%s1 + $0x20] sm:$0xff]
        %v253 = vld [vmem:[%s1 + $0x28] sm:$0xff]
        %v254 = vld [vmem:[%s1 + $0x30] sm:$0xff]
        %v255 = vld [vmem:[%s1 + $0x38] sm:$0xff]
        %v256 = vld [vmem:[%s1 + $0x40] sm:$0xff]
        %v257 = vld [vmem:[%s1 + $0x48] sm:$0xff]
        %v258 = vld [vmem:[%s1 + $0x50] sm:$0xff]
        %v259 = vld [vmem:[%s1 + $0x58] sm:$0xff]
        %v260 = vld [vmem:[%s1 + $0x60] sm:$0xff]
        %v261 = vld [vmem:[%s1 + $0x68] sm:$0xff]
        %v262 = vld [vmem:[%s1 + $0x70] sm:$0xff]
        %v263 = vld [vmem:[%s1 + $0x78] sm:$0xff]
        %264 = vmatpush.msra.mxu0 %v263
        %265 = vmatpush.msra.mxu0 %v262
        %266 = vmatpush.msra.mxu0 %v261
        %267 = vmatpush.msra.mxu0 %v260
        %268 = vmatpush.msra.mxu0 %v259
        %269 = vmatpush.msra.mxu0 %v258
        %270 = vmatpush.msra.mxu0 %v257
        %271 = vmatpush.msra.mxu0 %v256
        %272 = vmatpush.msra.mxu0 %v255
        %273 = vmatpush.msra.mxu0 %v254
        %274 = vmatpush.msra.mxu0 %v253
        %275 = vmatpush.msra.mxu0 %v252
        %276 = vmatpush.msra.mxu0 %v251
        %277 = vmatpush.msra.mxu0 %v250
        %278 = vmatpush.msra.mxu0 %v249
        %279 = vmatpush.msra.mxu0 %v248
        %280 = vmatmul.f32.gmra.mxu0 %v200
        %v281 = vpop.f32.mrf.mxu0
        %v282 = vadd.f32 0.0, %v281
        %283 = vmatmul.f32.gmra.mxu0 %v201
        %v284 = vpop.f32.mrf.mxu0
        %v285 = vadd.f32 0.0, %v284
        %286 = vmatmul.f32.gmra.mxu0 %v202
        %v287 = vpop.f32.mrf.mxu0
        %v288 = vadd.f32 0.0, %v287
        %289 = vmatmul.f32.gmra.mxu0 %v203
        %v290 = vpop.f32.mrf.mxu0
        %v291 = vadd.f32 0.0, %v290
        %292 = vmatmul.f32.gmra.mxu0 %v204
        %v293 = vpop.f32.mrf.mxu0
        %v294 = vadd.f32 0.0, %v293
        %295 = vmatmul.f32.gmra.mxu0 %v205
        %v296 = vpop.f32.mrf.mxu0
        %v297 = vadd.f32 0.0, %v296
        %298 = vmatmul.f32.gmra.mxu0 %v206
        %v299 = vpop.f32.mrf.mxu0
        %v300 = vadd.f32 0.0, %v299
        %301 = vmatmul.f32.gmra.mxu0 %v207
        %v302 = vpop.f32.mrf.mxu0
        %v303 = vadd.f32 0.0, %v302
        %304 = vmatmul.f32.gmra.mxu0 %v208
        %v305 = vpop.f32.mrf.mxu0
        %v306 = vadd.f32 0.0, %v305
        %307 = vmatmul.f32.gmra.mxu0 %v209
        %v308 = vpop.f32.mrf.mxu0
        %v309 = vadd.f32 0.0, %v308
        %310 = vmatmul.f32.gmra.mxu0 %v210
        %v311 = vpop.f32.mrf.mxu0
        %v312 = vadd.f32 0.0, %v311
        %313 = vmatmul.f32.gmra.mxu0 %v211
        %v314 = vpop.f32.mrf.mxu0
        %v315 = vadd.f32 0.0, %v314
        %316 = vmatmul.f32.gmra.mxu0 %v212
        %v317 = vpop.f32.mrf.mxu0
        %v318 = vadd.f32 0.0, %v317
        %319 = vmatmul.f32.gmra.mxu0 %v213
        %v320 = vpop.f32.mrf.mxu0
        %v321 = vadd.f32 0.0, %v320
        %322 = vmatmul.f32.gmra.mxu0 %v214
        %v323 = vpop.f32.mrf.mxu0
        %v324 = vadd.f32 0.0, %v323
        %325 = vmatmul.f32.gmra.mxu0 %v215
        %v326 = vpop.f32.mrf.mxu0
        %v327 = vadd.f32 0.0, %v326
        %328 = vmatmul.f32.gmra.mxu0 %v216
        %v329 = vpop.f32.mrf.mxu0
        %v330 = vadd.f32 0.0, %v329
        %331 = vmatmul.f32.gmra.mxu0 %v217
        %v332 = vpop.f32.mrf.mxu0
        %v333 = vadd.f32 0.0, %v332
        %334 = vmatmul.f32.gmra.mxu0 %v218
        %v335 = vpop.f32.mrf.mxu0
        %v336 = vadd.f32 0.0, %v335
        %337 = vmatmul.f32.gmra.mxu0 %v219
        %v338 = vpop.f32.mrf.mxu0
        %v339 = vadd.f32 0.0, %v338
        %340 = vmatmul.f32.gmra.mxu0 %v220
        %v341 = vpop.f32.mrf.mxu0
        %v342 = vadd.f32 0.0, %v341
        %343 = vmatmul.f32.gmra.mxu0 %v221
        %v344 = vpop.f32.mrf.mxu0
        %v345 = vadd.f32 0.0, %v344
        %346 = vmatmul.f32.gmra.mxu0 %v222
        %v347 = vpop.f32.mrf.mxu0
        %v348 = vadd.f32 0.0, %v347
        %349 = vmatmul.f32.gmra.mxu0 %v223
        %v350 = vpop.f32.mrf.mxu0
        %v351 = vadd.f32 0.0, %v350
        %352 = vmatmul.f32.gmra.mxu0 %v224
        %v353 = vpop.f32.mrf.mxu0
        %v354 = vadd.f32 0.0, %v353
        %355 = vmatmul.f32.gmra.mxu0 %v225
        %v356 = vpop.f32.mrf.mxu0
        %v357 = vadd.f32 0.0, %v356
        %358 = vmatmul.f32.gmra.mxu0 %v226
        %v359 = vpop.f32.mrf.mxu0
        %v360 = vadd.f32 0.0, %v359
        %361 = vmatmul.f32.gmra.mxu0 %v227
        %v362 = vpop.f32.mrf.mxu0
        %v363 = vadd.f32 0.0, %v362
        %364 = vmatmul.f32.gmra.mxu0 %v228
        %v365 = vpop.f32.mrf.mxu0
        %v366 = vadd.f32 0.0, %v365
        %367 = vmatmul.f32.gmra.mxu0 %v229
        %v368 = vpop.f32.mrf.mxu0
        %v369 = vadd.f32 0.0, %v368
        %370 = vmatmul.f32.gmra.mxu0 %v230
        %v371 = vpop.f32.mrf.mxu0
        %v372 = vadd.f32 0.0, %v371
        %373 = vmatmul.f32.gmra.mxu0 %v231
        %v374 = vpop.f32.mrf.mxu0
        %v375 = vadd.f32 0.0, %v374
        %376 = vmatmul.f32.gmra.mxu0 %v232
        %v377 = vpop.f32.mrf.mxu0
        %378 = vmatmul.f32.gmra.mxu0 %v233
        %v379 = vpop.f32.mrf.mxu0
        %380 = vmatmul.f32.gmra.mxu0 %v234
        %v381 = vpop.f32.mrf.mxu0
        %382 = vmatmul.f32.gmra.mxu0 %v235
        %v383 = vpop.f32.mrf.mxu0
        %384 = vmatmul.f32.gmra.mxu0 %v236
        %v385 = vpop.f32.mrf.mxu0
        %386 = vmatmul.f32.gmra.mxu0 %v237
        %v387 = vpop.f32.mrf.mxu0
        %388 = vmatmul.f32.gmra.mxu0 %v238
        %v389 = vpop.f32.mrf.mxu0
        %390 = vmatmul.f32.gmra.mxu0 %v239
        %v391 = vpop.f32.mrf.mxu0
        %392 = vmatmul.f32.gmra.mxu0 %v240
        %v393 = vpop.f32.mrf.mxu0
        %394 = vmatmul.f32.gmra.mxu0 %v241
        %v395 = vpop.f32.mrf.mxu0
        %396 = vmatmul.f32.gmra.mxu0 %v242
        %v397 = vpop.f32.mrf.mxu0
        %398 = vmatmul.f32.gmra.mxu0 %v243
        %v399 = vpop.f32.mrf.mxu0
        %400 = vmatmul.f32.gmra.mxu0 %v244
        %v401 = vpop.f32.mrf.mxu0
        %402 = vmatmul.f32.gmra.mxu0 %v245
        %v403 = vpop.f32.mrf.mxu0
        %404 = vmatmul.f32.gmra.mxu0 %v246
        %v405 = vpop.f32.mrf.mxu0
        %406 = vmatmul.f32.gmra.mxu0 %v247
        %v407 = vpop.f32.mrf.mxu0
        %408 = vdwg.mxu0
        %s409 = scalar_lea.vmem %s1, 128
        %v410 = vld [vmem:[%s409] sm:$0xff]
        %v411 = vld [vmem:[%s409 + $0x8] sm:$0xff]
        %v412 = vld [vmem:[%s409 + $0x10] sm:$0xff]
        %v413 = vld [vmem:[%s409 + $0x18] sm:$0xff]
        %v414 = vld [vmem:[%s409 + $0x20] sm:$0xff]
        %v415 = vld [vmem:[%s409 + $0x28] sm:$0xff]
        %v416 = vld [vmem:[%s409 + $0x30] sm:$0xff]
        %v417 = vld [vmem:[%s409 + $0x38] sm:$0xff]
        %v418 = vld [vmem:[%s409 + $0x40] sm:$0xff]
        %v419 = vld [vmem:[%s409 + $0x48] sm:$0xff]
        %v420 = vld [vmem:[%s409 + $0x50] sm:$0xff]
        %v421 = vld [vmem:[%s409 + $0x58] sm:$0xff]
        %v422 = vld [vmem:[%s409 + $0x60] sm:$0xff]
        %v423 = vld [vmem:[%s409 + $0x68] sm:$0xff]
        %v424 = vld [vmem:[%s409 + $0x70] sm:$0xff]
        %v425 = vld [vmem:[%s409 + $0x78] sm:$0xff]
        %426 = vmatpush.msra.mxu0 %v425
        %427 = vmatpush.msra.mxu0 %v424
        %428 = vmatpush.msra.mxu0 %v423
        %429 = vmatpush.msra.mxu0 %v422
        %430 = vmatpush.msra.mxu0 %v421
        %431 = vmatpush.msra.mxu0 %v420
        %432 = vmatpush.msra.mxu0 %v419
        %433 = vmatpush.msra.mxu0 %v418
        %434 = vmatpush.msra.mxu0 %v417
        %435 = vmatpush.msra.mxu0 %v416
        %436 = vmatpush.msra.mxu0 %v415
        %437 = vmatpush.msra.mxu0 %v414
        %438 = vmatpush.msra.mxu0 %v413
        %439 = vmatpush.msra.mxu0 %v412
        %440 = vmatpush.msra.mxu0 %v411
        %441 = vmatpush.msra.mxu0 %v410
        %442 = vmatmul.f32.gmra.mxu0 %v200
        %v443 = vpop.f32.mrf.mxu0
        %v444 = vadd.f32 0.0, %v443
        %445 = vmatmul.f32.gmra.mxu0 %v201
        %v446 = vpop.f32.mrf.mxu0
        %v447 = vadd.f32 0.0, %v446
        %448 = vmatmul.f32.gmra.mxu0 %v202
        %v449 = vpop.f32.mrf.mxu0
        %v450 = vadd.f32 0.0, %v449
        %451 = vmatmul.f32.gmra.mxu0 %v203
        %v452 = vpop.f32.mrf.mxu0
        %v453 = vadd.f32 0.0, %v452
        %454 = vmatmul.f32.gmra.mxu0 %v204
        %v455 = vpop.f32.mrf.mxu0
        %v456 = vadd.f32 0.0, %v455
        %457 = vmatmul.f32.gmra.mxu0 %v205
        %v458 = vpop.f32.mrf.mxu0
        %v459 = vadd.f32 0.0, %v458
        %460 = vmatmul.f32.gmra.mxu0 %v206
        %v461 = vpop.f32.mrf.mxu0
        %v462 = vadd.f32 0.0, %v461
        %463 = vmatmul.f32.gmra.mxu0 %v207
        %v464 = vpop.f32.mrf.mxu0
        %v465 = vadd.f32 0.0, %v464
        %466 = vmatmul.f32.gmra.mxu0 %v208
        %v467 = vpop.f32.mrf.mxu0
        %v468 = vadd.f32 0.0, %v467
        %469 = vmatmul.f32.gmra.mxu0 %v209
        %v470 = vpop.f32.mrf.mxu0
        %v471 = vadd.f32 0.0, %v470
        %472 = vmatmul.f32.gmra.mxu0 %v210
        %v473 = vpop.f32.mrf.mxu0
        %v474 = vadd.f32 0.0, %v473
        %475 = vmatmul.f32.gmra.mxu0 %v211
        %v476 = vpop.f32.mrf.mxu0
        %v477 = vadd.f32 0.0, %v476
        %478 = vmatmul.f32.gmra.mxu0 %v212
        %v479 = vpop.f32.mrf.mxu0
        %v480 = vadd.f32 0.0, %v479
        %481 = vmatmul.f32.gmra.mxu0 %v213
        %v482 = vpop.f32.mrf.mxu0
        %v483 = vadd.f32 0.0, %v482
        %484 = vmatmul.f32.gmra.mxu0 %v214
        %v485 = vpop.f32.mrf.mxu0
        %v486 = vadd.f32 0.0, %v485
        %487 = vmatmul.f32.gmra.mxu0 %v215
        %v488 = vpop.f32.mrf.mxu0
        %v489 = vadd.f32 0.0, %v488
        %490 = vmatmul.f32.gmra.mxu0 %v216
        %v491 = vpop.f32.mrf.mxu0
        %v492 = vadd.f32 0.0, %v491
        %493 = vmatmul.f32.gmra.mxu0 %v217
        %v494 = vpop.f32.mrf.mxu0
        %v495 = vadd.f32 0.0, %v494
        %496 = vmatmul.f32.gmra.mxu0 %v218
        %v497 = vpop.f32.mrf.mxu0
        %v498 = vadd.f32 0.0, %v497
        %499 = vmatmul.f32.gmra.mxu0 %v219
        %v500 = vpop.f32.mrf.mxu0
        %v501 = vadd.f32 0.0, %v500
        %502 = vmatmul.f32.gmra.mxu0 %v220
        %v503 = vpop.f32.mrf.mxu0
        %v504 = vadd.f32 0.0, %v503
        %505 = vmatmul.f32.gmra.mxu0 %v221
        %v506 = vpop.f32.mrf.mxu0
        %v507 = vadd.f32 0.0, %v506
        %508 = vmatmul.f32.gmra.mxu0 %v222
        %v509 = vpop.f32.mrf.mxu0
        %v510 = vadd.f32 0.0, %v509
        %511 = vmatmul.f32.gmra.mxu0 %v223
        %v512 = vpop.f32.mrf.mxu0
        %v513 = vadd.f32 0.0, %v512
        %514 = vmatmul.f32.gmra.mxu0 %v224
        %v515 = vpop.f32.mrf.mxu0
        %v516 = vadd.f32 0.0, %v515
        %517 = vmatmul.f32.gmra.mxu0 %v225
        %v518 = vpop.f32.mrf.mxu0
        %v519 = vadd.f32 0.0, %v518
        %520 = vmatmul.f32.gmra.mxu0 %v226
        %v521 = vpop.f32.mrf.mxu0
        %v522 = vadd.f32 0.0, %v521
        %523 = vmatmul.f32.gmra.mxu0 %v227
        %v524 = vpop.f32.mrf.mxu0
        %v525 = vadd.f32 0.0, %v524
        %526 = vmatmul.f32.gmra.mxu0 %v228
        %v527 = vpop.f32.mrf.mxu0
        %v528 = vadd.f32 0.0, %v527
        %529 = vmatmul.f32.gmra.mxu0 %v229
        %v530 = vpop.f32.mrf.mxu0
        %v531 = vadd.f32 0.0, %v530
        %532 = vmatmul.f32.gmra.mxu0 %v230
        %v533 = vpop.f32.mrf.mxu0
        %v534 = vadd.f32 0.0, %v533
        %535 = vmatmul.f32.gmra.mxu0 %v231
        %v536 = vpop.f32.mrf.mxu0
        %v537 = vadd.f32 0.0, %v536
        %538 = vmatmul.f32.gmra.mxu0 %v232
        %v539 = vpop.f32.mrf.mxu0
        %v540 = vadd.f32 0.0, %v539
        %541 = vmatmul.f32.gmra.mxu0 %v233
        %v542 = vpop.f32.mrf.mxu0
        %v543 = vadd.f32 0.0, %v542
        %544 = vmatmul.f32.gmra.mxu0 %v234
        %v545 = vpop.f32.mrf.mxu0
        %v546 = vadd.f32 0.0, %v545
        %547 = vmatmul.f32.gmra.mxu0 %v235
        %v548 = vpop.f32.mrf.mxu0
        %v549 = vadd.f32 0.0, %v548
        %550 = vmatmul.f32.gmra.mxu0 %v236
        %v551 = vpop.f32.mrf.mxu0
        %v552 = vadd.f32 0.0, %v551
        %553 = vmatmul.f32.gmra.mxu0 %v237
        %v554 = vpop.f32.mrf.mxu0
        %v555 = vadd.f32 0.0, %v554
        %556 = vmatmul.f32.gmra.mxu0 %v238
        %v557 = vpop.f32.mrf.mxu0
        %v558 = vadd.f32 0.0, %v557
        %559 = vmatmul.f32.gmra.mxu0 %v239
        %v560 = vpop.f32.mrf.mxu0
        %v561 = vadd.f32 0.0, %v560
        %562 = vmatmul.f32.gmra.mxu0 %v240
        %v563 = vpop.f32.mrf.mxu0
        %v564 = vadd.f32 0.0, %v563
        %565 = vmatmul.f32.gmra.mxu0 %v241
        %v566 = vpop.f32.mrf.mxu0
        %v567 = vadd.f32 0.0, %v566
        %568 = vmatmul.f32.gmra.mxu0 %v242
        %v569 = vpop.f32.mrf.mxu0
        %v570 = vadd.f32 0.0, %v569
        %571 = vmatmul.f32.gmra.mxu0 %v243
        %v572 = vpop.f32.mrf.mxu0
        %v573 = vadd.f32 0.0, %v572
        %574 = vmatmul.f32.gmra.mxu0 %v244
        %v575 = vpop.f32.mrf.mxu0
        %v576 = vadd.f32 0.0, %v575
        %577 = vmatmul.f32.gmra.mxu0 %v245
        %v578 = vpop.f32.mrf.mxu0
        %v579 = vadd.f32 0.0, %v578
        %580 = vmatmul.f32.gmra.mxu0 %v246
        %v581 = vpop.f32.mrf.mxu0
        %v582 = vadd.f32 0.0, %v581
        %583 = vmatmul.f32.gmra.mxu0 %v247
        %v584 = vpop.f32.mrf.mxu0
        %v585 = vadd.f32 0.0, %v584
        %586 = vdwg.mxu0
        %s587 = scalar_lea.vmem %s1, 256
        %v588 = vld [vmem:[%s587] sm:$0xff]
        %v589 = vld [vmem:[%s587 + $0x8] sm:$0xff]
        %v590 = vld [vmem:[%s587 + $0x10] sm:$0xff]
        %v591 = vld [vmem:[%s587 + $0x18] sm:$0xff]
        %v592 = vld [vmem:[%s587 + $0x20] sm:$0xff]
        %v593 = vld [vmem:[%s587 + $0x28] sm:$0xff]
        %v594 = vld [vmem:[%s587 + $0x30] sm:$0xff]
        %v595 = vld [vmem:[%s587 + $0x38] sm:$0xff]
        %v596 = vld [vmem:[%s587 + $0x40] sm:$0xff]
        %v597 = vld [vmem:[%s587 + $0x48] sm:$0xff]
        %v598 = vld [vmem:[%s587 + $0x50] sm:$0xff]
        %v599 = vld [vmem:[%s587 + $0x58] sm:$0xff]
        %v600 = vld [vmem:[%s587 + $0x60] sm:$0xff]
        %v601 = vld [vmem:[%s587 + $0x68] sm:$0xff]
        %v602 = vld [vmem:[%s587 + $0x70] sm:$0xff]
        %v603 = vld [vmem:[%s587 + $0x78] sm:$0xff]
        %604 = vmatpush.msra.mxu0 %v603
        %605 = vmatpush.msra.mxu0 %v602
        %606 = vmatpush.msra.mxu0 %v601
        %607 = vmatpush.msra.mxu0 %v600
        %608 = vmatpush.msra.mxu0 %v599
        %609 = vmatpush.msra.mxu0 %v598
        %610 = vmatpush.msra.mxu0 %v597
        %611 = vmatpush.msra.mxu0 %v596
        %612 = vmatpush.msra.mxu0 %v595
        %613 = vmatpush.msra.mxu0 %v594
        %614 = vmatpush.msra.mxu0 %v593
        %615 = vmatpush.msra.mxu0 %v592
        %616 = vmatpush.msra.mxu0 %v591
        %617 = vmatpush.msra.mxu0 %v590
        %618 = vmatpush.msra.mxu0 %v589
        %619 = vmatpush.msra.mxu0 %v588
        %620 = vmatmul.f32.gmra.mxu0 %v200
        %v621 = vpop.f32.mrf.mxu0
        %622 = vmatmul.f32.gmra.mxu0 %v201
        %v623 = vpop.f32.mrf.mxu0
        %624 = vmatmul.f32.gmra.mxu0 %v202
        %v625 = vpop.f32.mrf.mxu0
        %626 = vmatmul.f32.gmra.mxu0 %v203
        %v627 = vpop.f32.mrf.mxu0
        %628 = vmatmul.f32.gmra.mxu0 %v204
        %v629 = vpop.f32.mrf.mxu0
        %630 = vmatmul.f32.gmra.mxu0 %v205
        %v631 = vpop.f32.mrf.mxu0
        %632 = vmatmul.f32.gmra.mxu0 %v206
        %v633 = vpop.f32.mrf.mxu0
        %634 = vmatmul.f32.gmra.mxu0 %v207
        %v635 = vpop.f32.mrf.mxu0
        %636 = vmatmul.f32.gmra.mxu0 %v208
        %v637 = vpop.f32.mrf.mxu0
        %638 = vmatmul.f32.gmra.mxu0 %v209
        %v639 = vpop.f32.mrf.mxu0
        %640 = vmatmul.f32.gmra.mxu0 %v210
        %v641 = vpop.f32.mrf.mxu0
        %642 = vmatmul.f32.gmra.mxu0 %v211
        %v643 = vpop.f32.mrf.mxu0
        %644 = vmatmul.f32.gmra.mxu0 %v212
        %v645 = vpop.f32.mrf.mxu0
        %646 = vmatmul.f32.gmra.mxu0 %v213
        %v647 = vpop.f32.mrf.mxu0
        %648 = vmatmul.f32.gmra.mxu0 %v214
        %v649 = vpop.f32.mrf.mxu0
        %650 = vmatmul.f32.gmra.mxu0 %v215
        %v651 = vpop.f32.mrf.mxu0
        %652 = vmatmul.f32.gmra.mxu0 %v216
        %v653 = vpop.f32.mrf.mxu0
        %v654 = vadd.f32 0.0, %v653
        %655 = vmatmul.f32.gmra.mxu0 %v217
        %v656 = vpop.f32.mrf.mxu0
        %v657 = vadd.f32 0.0, %v656
        %658 = vmatmul.f32.gmra.mxu0 %v218
        %v659 = vpop.f32.mrf.mxu0
        %v660 = vadd.f32 0.0, %v659
        %661 = vmatmul.f32.gmra.mxu0 %v219
        %v662 = vpop.f32.mrf.mxu0
        %v663 = vadd.f32 0.0, %v662
        %664 = vmatmul.f32.gmra.mxu0 %v220
        %v665 = vpop.f32.mrf.mxu0
        %v666 = vadd.f32 0.0, %v665
        %667 = vmatmul.f32.gmra.mxu0 %v221
        %v668 = vpop.f32.mrf.mxu0
        %v669 = vadd.f32 0.0, %v668
        %670 = vmatmul.f32.gmra.mxu0 %v222
        %v671 = vpop.f32.mrf.mxu0
        %v672 = vadd.f32 0.0, %v671
        %673 = vmatmul.f32.gmra.mxu0 %v223
        %v674 = vpop.f32.mrf.mxu0
        %v675 = vadd.f32 0.0, %v674
        %676 = vmatmul.f32.gmra.mxu0 %v224
        %v677 = vpop.f32.mrf.mxu0
        %v678 = vadd.f32 0.0, %v677
        %679 = vmatmul.f32.gmra.mxu0 %v225
        %v680 = vpop.f32.mrf.mxu0
        %v681 = vadd.f32 0.0, %v680
        %682 = vmatmul.f32.gmra.mxu0 %v226
        %v683 = vpop.f32.mrf.mxu0
        %v684 = vadd.f32 0.0, %v683
        %685 = vmatmul.f32.gmra.mxu0 %v227
        %v686 = vpop.f32.mrf.mxu0
        %v687 = vadd.f32 0.0, %v686
        %688 = vmatmul.f32.gmra.mxu0 %v228
        %v689 = vpop.f32.mrf.mxu0
        %v690 = vadd.f32 0.0, %v689
        %691 = vmatmul.f32.gmra.mxu0 %v229
        %v692 = vpop.f32.mrf.mxu0
        %v693 = vadd.f32 0.0, %v692
        %694 = vmatmul.f32.gmra.mxu0 %v230
        %v695 = vpop.f32.mrf.mxu0
        %v696 = vadd.f32 0.0, %v695
        %697 = vmatmul.f32.gmra.mxu0 %v231
        %v698 = vpop.f32.mrf.mxu0
        %v699 = vadd.f32 0.0, %v698
        %700 = vmatmul.f32.gmra.mxu0 %v232
        %v701 = vpop.f32.mrf.mxu0
        %v702 = vadd.f32 0.0, %v701
        %703 = vmatmul.f32.gmra.mxu0 %v233
        %v704 = vpop.f32.mrf.mxu0
        %v705 = vadd.f32 0.0, %v704
        %706 = vmatmul.f32.gmra.mxu0 %v234
        %v707 = vpop.f32.mrf.mxu0
        %v708 = vadd.f32 0.0, %v707
        %709 = vmatmul.f32.gmra.mxu0 %v235
        %v710 = vpop.f32.mrf.mxu0
        %v711 = vadd.f32 0.0, %v710
        %712 = vmatmul.f32.gmra.mxu0 %v236
        %v713 = vpop.f32.mrf.mxu0
        %v714 = vadd.f32 0.0, %v713
        %715 = vmatmul.f32.gmra.mxu0 %v237
        %v716 = vpop.f32.mrf.mxu0
        %v717 = vadd.f32 0.0, %v716
        %718 = vmatmul.f32.gmra.mxu0 %v238
        %v719 = vpop.f32.mrf.mxu0
        %v720 = vadd.f32 0.0, %v719
        %721 = vmatmul.f32.gmra.mxu0 %v239
        %v722 = vpop.f32.mrf.mxu0
        %v723 = vadd.f32 0.0, %v722
        %724 = vmatmul.f32.gmra.mxu0 %v240
        %v725 = vpop.f32.mrf.mxu0
        %v726 = vadd.f32 0.0, %v725
        %727 = vmatmul.f32.gmra.mxu0 %v241
        %v728 = vpop.f32.mrf.mxu0
        %v729 = vadd.f32 0.0, %v728
        %730 = vmatmul.f32.gmra.mxu0 %v242
        %v731 = vpop.f32.mrf.mxu0
        %v732 = vadd.f32 0.0, %v731
        %733 = vmatmul.f32.gmra.mxu0 %v243
        %v734 = vpop.f32.mrf.mxu0
        %v735 = vadd.f32 0.0, %v734
        %736 = vmatmul.f32.gmra.mxu0 %v244
        %v737 = vpop.f32.mrf.mxu0
        %v738 = vadd.f32 0.0, %v737
        %739 = vmatmul.f32.gmra.mxu0 %v245
        %v740 = vpop.f32.mrf.mxu0
        %v741 = vadd.f32 0.0, %v740
        %742 = vmatmul.f32.gmra.mxu0 %v246
        %v743 = vpop.f32.mrf.mxu0
        %v744 = vadd.f32 0.0, %v743
        %745 = vmatmul.f32.gmra.mxu0 %v247
        %v746 = vpop.f32.mrf.mxu0
        %v747 = vadd.f32 0.0, %v746
        %748 = vdwg.mxu0
        %v749 = vld [vmem:[%s2] sm:$0x1]
        %v751 = vperm.slane %v749, 0
        %v753 = vadd.f32 %v444, %v751
        %v754 = vadd.f32 %v447, %v751
        %v755 = vadd.f32 %v450, %v751
        %v756 = vadd.f32 %v453, %v751
        %v757 = vadd.f32 %v456, %v751
        %v758 = vadd.f32 %v459, %v751
        %v759 = vadd.f32 %v462, %v751
        %v760 = vadd.f32 %v465, %v751
        %v761 = vadd.f32 %v468, %v751
        %v762 = vadd.f32 %v471, %v751
        %v763 = vadd.f32 %v474, %v751
        %v764 = vadd.f32 %v477, %v751
        %v765 = vadd.f32 %v480, %v751
        %v766 = vadd.f32 %v483, %v751
        %v767 = vadd.f32 %v486, %v751
        %v768 = vadd.f32 %v489, %v751
        %v769 = vadd.f32 %v492, %v751
        %v770 = vadd.f32 %v495, %v751
        %v771 = vadd.f32 %v498, %v751
        %v772 = vadd.f32 %v501, %v751
        %v773 = vadd.f32 %v504, %v751
        %v774 = vadd.f32 %v507, %v751
        %v775 = vadd.f32 %v510, %v751
        %v776 = vadd.f32 %v513, %v751
        %v777 = vadd.f32 %v516, %v751
        %v778 = vadd.f32 %v519, %v751
        %v779 = vadd.f32 %v522, %v751
        %v780 = vadd.f32 %v525, %v751
        %v781 = vadd.f32 %v528, %v751
        %v782 = vadd.f32 %v531, %v751
        %v783 = vadd.f32 %v534, %v751
        %v784 = vadd.f32 %v537, %v751
        %v785 = vadd.f32 %v540, %v751
        %v786 = vadd.f32 %v543, %v751
        %v787 = vadd.f32 %v546, %v751
        %v788 = vadd.f32 %v549, %v751
        %v789 = vadd.f32 %v552, %v751
        %v790 = vadd.f32 %v555, %v751
        %v791 = vadd.f32 %v558, %v751
        %v792 = vadd.f32 %v561, %v751
        %v793 = vadd.f32 %v564, %v751
        %v794 = vadd.f32 %v567, %v751
        %v795 = vadd.f32 %v570, %v751
        %v796 = vadd.f32 %v573, %v751
        %v797 = vadd.f32 %v576, %v751
        %v798 = vadd.f32 %v579, %v751
        %v799 = vadd.f32 %v582, %v751
        %v800 = vadd.f32 %v585, %v751
        %v801 = vadd.f32 %v753, 0.0
        %v802 = vadd.f32 %v754, 0.0
        %v803 = vadd.f32 %v755, 0.0
        %v804 = vadd.f32 %v756, 0.0
        %v805 = vadd.f32 %v757, 0.0
        %v806 = vadd.f32 %v758, 0.0
        %v807 = vadd.f32 %v759, 0.0
        %v808 = vadd.f32 %v760, 0.0
        %v809 = vadd.f32 %v761, 0.0
        %v810 = vadd.f32 %v762, 0.0
        %v811 = vadd.f32 %v763, 0.0
        %v812 = vadd.f32 %v764, 0.0
        %v813 = vadd.f32 %v765, 0.0
        %v814 = vadd.f32 %v766, 0.0
        %v815 = vadd.f32 %v767, 0.0
        %v816 = vadd.f32 %v768, 0.0
        %v817 = vadd.f32 %v769, %v282
        %v818 = vadd.f32 %v770, %v285
        %v819 = vadd.f32 %v771, %v288
        %v820 = vadd.f32 %v772, %v291
        %v821 = vadd.f32 %v773, %v294
        %v822 = vadd.f32 %v774, %v297
        %v823 = vadd.f32 %v775, %v300
        %v824 = vadd.f32 %v776, %v303
        %v825 = vadd.f32 %v777, %v306
        %v826 = vadd.f32 %v778, %v309
        %v827 = vadd.f32 %v779, %v312
        %v828 = vadd.f32 %v780, %v315
        %v829 = vadd.f32 %v781, %v318
        %v830 = vadd.f32 %v782, %v321
        %v831 = vadd.f32 %v783, %v324
        %v832 = vadd.f32 %v784, %v327
        %v833 = vadd.f32 %v785, %v330
        %v834 = vadd.f32 %v786, %v333
        %v835 = vadd.f32 %v787, %v336
        %v836 = vadd.f32 %v788, %v339
        %v837 = vadd.f32 %v789, %v342
        %v838 = vadd.f32 %v790, %v345
        %v839 = vadd.f32 %v791, %v348
        %v840 = vadd.f32 %v792, %v351
        %v841 = vadd.f32 %v793, %v354
        %v842 = vadd.f32 %v794, %v357
        %v843 = vadd.f32 %v795, %v360
        %v844 = vadd.f32 %v796, %v363
        %v845 = vadd.f32 %v797, %v366
        %v846 = vadd.f32 %v798, %v369
        %v847 = vadd.f32 %v799, %v372
        %v848 = vadd.f32 %v800, %v375
        %v849 = vadd.f32 %v801, %v654
        %v850 = vadd.f32 %v802, %v657
        %v851 = vadd.f32 %v803, %v660
        %v852 = vadd.f32 %v804, %v663
        %v853 = vadd.f32 %v805, %v666
        %v854 = vadd.f32 %v806, %v669
        %v855 = vadd.f32 %v807, %v672
        %v856 = vadd.f32 %v808, %v675
        %v857 = vadd.f32 %v809, %v678
        %v858 = vadd.f32 %v810, %v681
        %v859 = vadd.f32 %v811, %v684
        %v860 = vadd.f32 %v812, %v687
        %v861 = vadd.f32 %v813, %v690
        %v862 = vadd.f32 %v814, %v693
        %v863 = vadd.f32 %v815, %v696
        %v864 = vadd.f32 %v816, %v699
        %v865 = vadd.f32 %v817, %v702
        %v866 = vadd.f32 %v818, %v705
        %v867 = vadd.f32 %v819, %v708
        %v868 = vadd.f32 %v820, %v711
        %v869 = vadd.f32 %v821, %v714
        %v870 = vadd.f32 %v822, %v717
        %v871 = vadd.f32 %v823, %v720
        %v872 = vadd.f32 %v824, %v723
        %v873 = vadd.f32 %v825, %v726
        %v874 = vadd.f32 %v826, %v729
        %v875 = vadd.f32 %v827, %v732
        %v876 = vadd.f32 %v828, %v735
        %v877 = vadd.f32 %v829, %v738
        %v878 = vadd.f32 %v830, %v741
        %v879 = vadd.f32 %v831, %v744
        %v880 = vadd.f32 %v832, %v747
        %v881 = vadd.f32 %v833, 0.0
        %v882 = vadd.f32 %v834, 0.0
        %v883 = vadd.f32 %v835, 0.0
        %v884 = vadd.f32 %v836, 0.0
        %v885 = vadd.f32 %v837, 0.0
        %v886 = vadd.f32 %v838, 0.0
        %v887 = vadd.f32 %v839, 0.0
        %v888 = vadd.f32 %v840, 0.0
        %v889 = vadd.f32 %v841, 0.0
        %v890 = vadd.f32 %v842, 0.0
        %v891 = vadd.f32 %v843, 0.0
        %v892 = vadd.f32 %v844, 0.0
        %v893 = vadd.f32 %v845, 0.0
        %v894 = vadd.f32 %v846, 0.0
        %v895 = vadd.f32 %v847, 0.0
        %v896 = vadd.f32 %v848, 0.0
        %897 = vst [vmem:[%s188] sm:$0xff] %v849
        %898 = vst [vmem:[%s188 + $0x8] sm:$0xff] %v850
        %899 = vst [vmem:[%s188 + $0x10] sm:$0xff] %v851
        %900 = vst [vmem:[%s188 + $0x18] sm:$0xff] %v852
        %901 = vst [vmem:[%s188 + $0x20] sm:$0xff] %v853
        %902 = vst [vmem:[%s188 + $0x28] sm:$0xff] %v854
        %903 = vst [vmem:[%s188 + $0x30] sm:$0xff] %v855
        %904 = vst [vmem:[%s188 + $0x38] sm:$0xff] %v856
        %905 = vst [vmem:[%s188 + $0x40] sm:$0xff] %v857
        %906 = vst [vmem:[%s188 + $0x48] sm:$0xff] %v858
        %907 = vst [vmem:[%s188 + $0x50] sm:$0xff] %v859
        %908 = vst [vmem:[%s188 + $0x58] sm:$0xff] %v860
        %909 = vst [vmem:[%s188 + $0x60] sm:$0xff] %v861
        %910 = vst [vmem:[%s188 + $0x68] sm:$0xff] %v862
        %911 = vst [vmem:[%s188 + $0x70] sm:$0xff] %v863
        %912 = vst [vmem:[%s188 + $0x78] sm:$0xff] %v864
        %913 = vst [vmem:[%s188 + $0x80] sm:$0xff] %v865
        %914 = vst [vmem:[%s188 + $0x88] sm:$0xff] %v866
        %915 = vst [vmem:[%s188 + $0x90] sm:$0xff] %v867
        %916 = vst [vmem:[%s188 + $0x98] sm:$0xff] %v868
        %917 = vst [vmem:[%s188 + $0xa0] sm:$0xff] %v869
        %918 = vst [vmem:[%s188 + $0xa8] sm:$0xff] %v870
        %919 = vst [vmem:[%s188 + $0xb0] sm:$0xff] %v871
        %920 = vst [vmem:[%s188 + $0xb8] sm:$0xff] %v872
        %921 = vst [vmem:[%s188 + $0xc0] sm:$0xff] %v873
        %922 = vst [vmem:[%s188 + $0xc8] sm:$0xff] %v874
        %923 = vst [vmem:[%s188 + $0xd0] sm:$0xff] %v875
        %924 = vst [vmem:[%s188 + $0xd8] sm:$0xff] %v876
        %925 = vst [vmem:[%s188 + $0xe0] sm:$0xff] %v877
        %926 = vst [vmem:[%s188 + $0xe8] sm:$0xff] %v878
        %927 = vst [vmem:[%s188 + $0xf0] sm:$0xff] %v879
        %928 = vst [vmem:[%s188 + $0xf8] sm:$0xff] %v880
        %929 = vst [vmem:[%s188 + $0x100] sm:$0xff] %v881
        %930 = vst [vmem:[%s188 + $0x108] sm:$0xff] %v882
        %931 = vst [vmem:[%s188 + $0x110] sm:$0xff] %v883
        %932 = vst [vmem:[%s188 + $0x118] sm:$0xff] %v884
        %933 = vst [vmem:[%s188 + $0x120] sm:$0xff] %v885
        %934 = vst [vmem:[%s188 + $0x128] sm:$0xff] %v886
        %935 = vst [vmem:[%s188 + $0x130] sm:$0xff] %v887
        %936 = vst [vmem:[%s188 + $0x138] sm:$0xff] %v888
        %937 = vst [vmem:[%s188 + $0x140] sm:$0xff] %v889
        %938 = vst [vmem:[%s188 + $0x148] sm:$0xff] %v890
        %939 = vst [vmem:[%s188 + $0x150] sm:$0xff] %v891
        %940 = vst [vmem:[%s188 + $0x158] sm:$0xff] %v892
        %941 = vst [vmem:[%s188 + $0x160] sm:$0xff] %v893
        %942 = vst [vmem:[%s188 + $0x168] sm:$0xff] %v894
        %943 = vst [vmem:[%s188 + $0x170] sm:$0xff] %v895
        %944 = vst [vmem:[%s188 + $0x178] sm:$0xff] %v896
        %s945 = sand.u32 %s109, 1
        %s946 = scalar_lea.sflag [#allocation3], %s945
        %s947 = sand.u32 %s109, 1
        %s948 = smul.addr %s947, 384
        %s949 = scalar_lea.vmem [#allocation2], %s948
        // Predicated region
        $region33: #{temporal1d_forward.1} parent=31 // pred_check
          %p950 = pneg %p119
        $region34: #{temporal1d_forward.1} parent=31 // pred_check_branch
          %952 = sbr.rel (%p950) target = $region36
        $region35: #{temporal1d_forward.1} parent=31 // pred_region
          %s953 = smul.u32 16, %s22
          %955 = vsyncadd %s946, 0
          %s956 = smul.addr %s21, 48
          %s957 = sadd.s32 %s953, %s956
          %s958 = smul.addr %s957, 8
          %s959 = scalar_lea.hbm %s3, %s958
          %s960 = sshll.u32 %s949, 4
          %s961 = int_to_ptr.vmem [resolvable:$true] %s960
          %s962 = sshll.u32 %s959, 4
          %s963 = int_to_ptr.hbm [resolvable:$true] %s962
          %968 = dma.vmem_to_hbm [thread:$0]  %s961, 6144, %s963, %s946, 128, 128, 8
        $region36: #{temporal1d_forward.1} parent=31 // pred_fallthru
          _
      $region32: #{temporal1d_forward.1} parent=5 // pred_fallthru
        _
      %p969 = scmp.le.s32.totalorder 2, %s12
      // Predicated region
      $region37: #{temporal1d_forward.1} parent=5 // pred_check
        %p970 = pneg %p969
      $region38: #{temporal1d_forward.1} parent=5 // pred_check_branch
        %972 = sbr.rel (%p970) target = $region40
      $region39: #{temporal1d_forward.1} parent=5 // pred_region
        %s973 = ssub.s32 %s12, 2
        // Predicated region
        $region41: #{temporal1d_forward.1} parent=39 // pred_check
          %p974 = pneg %p125
        $region42: #{temporal1d_forward.1} parent=39 // pred_check_branch
          %976 = sbr.rel (%p974) target = $region44
        $region43: #{temporal1d_forward.1} parent=39 // pred_region
          %s977 = sand.u32 %s110, 1
          %s978 = scalar_lea.sflag [#allocation3], %s977
          %s979 = sand.u32 %s110, 1
          %s980 = smul.addr %s979, 384
          %s981 = scalar_lea.vmem [#allocation2], %s980
          %983 = dma.done %s978, 6144
        $region44: #{temporal1d_forward.1} parent=39 // pred_fallthru
          _
      $region40: #{temporal1d_forward.1} parent=5 // pred_fallthru
        _
    $region6: #{temporal1d_forward.1} parent=1 // loop_footer
      %s16 = sadd.s32 1, %s12
    $region7: #{temporal1d_forward.1} parent=1 // loop_footer_branch
      %11 = sbr.rel target = $region3
    $region8: #{temporal1d_forward.1} parent=1 // loop_exit
      _
    %984 = vsyncpa [#allocation3], 1
    %s985 = scalar_lea.sflag [#allocation3], 1
    %986 = vsyncpa %s985, 1

</llo_original>
